<compile_context>
chip_gen: v7x
topology: tpu7x:2x2x1
jax: 0.10.0
libtpu: 0.0.40
codegen_flags: <defaults>
</compile_context>

<pallas_src>
import functools

import jax
import jax.numpy as jnp
from jax.experimental import pallas as pl
from jax.experimental.pallas import tpu as pltpu


def _round_up(n, m):
    return ((n + m - 1) // m) * m


def _pick_k_tile(f_pad, target):
    """Largest multiple of 128 that divides f_pad and is <= target."""
    n = f_pad // 128
    target_chunks = max(target // 128, 1)
    best = 1
    for d in range(1, n + 1):
        if n % d == 0 and d <= target_chunks:
            best = d
    return best * 128


def npos_kernel(x_ref, w_ref, b_ref, p_ref, out_ref, acc_ref, *, n_class):
    """One (batch-tile, K-tile) grid step of the NPOS forward.

    x_ref:   (B_TILE, K_TILE)  bf16 flattened-image tile
    w_ref:   (K_TILE, D_pad)   bf16 backbone-stub weight tile (streamed over K)
    b_ref:   (1, D_pad)        f32 backbone-stub bias
    p_ref:   (D_pad, C_pad)    bf16 prototypes: pre-normalized, 1/T folded in,
                               pre-transposed, zero cols beyond n_class
    out_ref: (B_TILE, 128)     f32 lane-dense score block (score broadcast
                               across lanes; wrapper reads lane 0)
    acc_ref: (B_TILE, D_pad)   f32 VMEM accumulator for z, resident across K
    """
    k = pl.program_id(1)

    @pl.when(k == 0)
    def _init():
        acc_ref[...] = jnp.zeros_like(acc_ref)

    # Streaming K-reduction of the backbone-stub matmul (bf16 in, f32 acc).
    acc_ref[...] += jnp.dot(
        x_ref[...], w_ref[...], preferred_element_type=jnp.float32
    )

    @pl.when(k == pl.num_programs(1) - 1)
    def _epilogue():
        z = acc_ref[...] + b_ref[...]

        # _project: spherical projection z / ||z||_2 via rsqrt * z (EUP op).
        # eps keeps padded (all-zero) batch rows finite instead of inf/NaN.
        inv_norm = jax.lax.rsqrt(
            jnp.sum(z * z, axis=1, keepdims=True) + jnp.float32(1e-12))
        z = (z * inv_norm).astype(jnp.bfloat16)

        # class_logit: prototypes are pre-normalized, pre-transposed, bf16,
        # with 1/temperature folded in -> single transpose-free MXU matmul.
        logits = jnp.dot(z, p_ref[...], preferred_element_type=jnp.float32)

        # Mask the lane-padding columns beyond the real class count.
        col = jax.lax.broadcasted_iota(jnp.int32, logits.shape, 1)
        logits = jnp.where(col < n_class, logits, -jnp.inf)

        # forward: since (logits - max) has row-max exactly 0,
        #   -max(softmax(logits)) == -1 / sum(exp(logits - max)).
        m = jnp.max(logits, axis=1, keepdims=True)
        sum_exp = jnp.sum(jnp.exp(logits - m), axis=1, keepdims=True)
        score = -pl.reciprocal(sum_exp, approx=False)

        # Lane-dense store: broadcast the (B_TILE, 1) score across 128 lanes.
        out_ref[...] = jnp.broadcast_to(score, out_ref.shape)


def npos_prepare_params(w_feat, b_feat, prototypes, temperature=0.1):
    """One-time padding / casting of the NPOS parameters.

    Hoisted out of the per-call forward so each forward only pads x
    (avoids a full f32 read + bf16 padded write of W on every call).
    """
    F, D = w_feat.shape
    C = prototypes.shape[0]
    F_pad = _round_up(F, 128)
    D_pad = _round_up(D, 128)
    C_pad = _round_up(C, 128)

    w_p = jnp.zeros((F_pad, D_pad), jnp.bfloat16).at[:F, :D].set(
        w_feat.astype(jnp.bfloat16))
    b_p = jnp.zeros((1, D_pad), jnp.float32).at[:, :D].set(
        jnp.reshape(b_feat, (1, -1)).astype(jnp.float32))

    # Prototypes: normalize, fold in 1/temperature, transpose to (D_pad, C_pad)
    # and cast to bf16 (padded cols beyond C stay zero; the kernel also masks
    # them with -inf — keep both in sync).
    p_hat = prototypes.astype(jnp.float32)
    p_hat = p_hat / (jnp.linalg.norm(p_hat, axis=-1, keepdims=True)
                     * jnp.float32(temperature))
    p_p = jnp.zeros((D_pad, C_pad), jnp.bfloat16).at[:D, :C].set(
        p_hat.T.astype(jnp.bfloat16))

    return dict(w=w_p, b=b_p, p=p_p, F=F, D=D, C=C)


def npos_forward(x, params, *, b_tile=512, k_tile=2048):
    """NPOS.forward(x): anomaly score, shape (B,)."""
    B = x.shape[0]
    x_flat = x.reshape(B, -1)                       # glue: NCHW -> (B, F)
    F = x_flat.shape[1]
    assert F == params["F"], (F, params["F"])

    w_p, b_p, p_p = params["w"], params["b"], params["p"]
    F_pad, D_pad = w_p.shape
    C_pad = p_p.shape[1]
    C = params["C"]
    OUT_LANES = 128

    # ---- tiling plan (MXU-lane / sublane aligned, no K over-padding) ----
    B_TILE = b_tile if B >= b_tile else max(8, _round_up(B, 8))
    B_pad = _round_up(B, B_TILE)
    K_TILE = _pick_k_tile(F_pad, k_tile)

    # Only x is padded per call; parameters were prepared once.
    x_p = jnp.zeros((B_pad, F_pad), jnp.bfloat16).at[:B, :F].set(
        x_flat.astype(jnp.bfloat16))

    grid = (B_pad // B_TILE, F_pad // K_TILE)
    n_btiles = grid[0]

    cost = pl.CostEstimate(
        flops=int(2 * B_pad * F_pad * D_pad + 2 * B_pad * D_pad * C_pad),
        transcendentals=int(B_pad * (C_pad + 1)),
        bytes_accessed=int(x_p.size * 2                 # x, bf16, read once
                           + n_btiles * w_p.size * 2    # W re-streamed / b-tile
                           + b_p.size * 4 + p_p.size * 2
                           + B_pad * OUT_LANES * 4),
    )

    out = pl.pallas_call(
        functools.partial(npos_kernel, n_class=C),
        out_shape=jax.ShapeDtypeStruct((B_pad, OUT_LANES), jnp.float32),
        grid_spec=pltpu.PrefetchScalarGridSpec(
            num_scalar_prefetch=0,
            grid=grid,
            in_specs=[
                pl.BlockSpec((B_TILE, K_TILE), lambda b, k: (b, k)),   # x
                pl.BlockSpec((K_TILE, D_pad), lambda b, k: (k, 0)),    # w_feat
                pl.BlockSpec((1, D_pad), lambda b, k: (0, 0)),         # b_feat
                pl.BlockSpec((D_pad, C_pad), lambda b, k: (0, 0)),     # protos^T
            ],
            out_specs=pl.BlockSpec((B_TILE, OUT_LANES), lambda b, k: (b, 0)),
            scratch_shapes=[pltpu.VMEM((B_TILE, D_pad), jnp.float32)],
        ),
        compiler_params=pltpu.CompilerParams(
            dimension_semantics=("parallel", "arbitrary"),
            vmem_limit_bytes=32 * 1024 * 1024,   # safe on v5e/v6e/v7x
        ),
        cost_estimate=cost,
    )(x_p, w_p, b_p, p_p)

    return out[:B, 0]


def npos_reference(x, w_feat, b_feat, prototypes, temperature=0.1):
    """Pure-JAX reference mirroring the PyTorch forward (same bf16 policy)."""
    B = x.shape[0]
    z = jnp.dot(x.reshape(B, -1).astype(jnp.bfloat16),
                w_feat.astype(jnp.bfloat16),
                preferred_element_type=jnp.float32) \
        + jnp.reshape(b_feat, (1, -1)).astype(jnp.float32)
    z = z / jnp.linalg.norm(z, axis=1, keepdims=True)
    p = prototypes.astype(jnp.float32)
    p = p / (jnp.linalg.norm(p, axis=-1, keepdims=True)
             * jnp.float32(temperature))
    logits = jnp.dot(z.astype(jnp.bfloat16), p.T.astype(jnp.bfloat16),
                     preferred_element_type=jnp.float32)
    logits = logits - jnp.max(logits, axis=1, keepdims=True)
    prob = jnp.exp(logits) / jnp.sum(jnp.exp(logits), axis=1, keepdims=True)
    return -jnp.max(prob, axis=1)


if __name__ == "__main__":
    # Small shapes consistent with the forward pass:
    # x: (B, C, H, W); backbone feature dim D (128-lane aligned stand-in for
    # backbone.num_features); n_class classes.
    B, Cch, H, W = 2, 3, 16, 16
    D = 128
    C_cls = 8
    F = Cch * H * W

    key = jax.random.PRNGKey(0)
    k_x, k_w, k_b, k_p, k_x2 = jax.random.split(key, 5)

    x = jax.random.normal(k_x, (B, Cch, H, W), dtype=jnp.float32)
    w_feat = jax.random.normal(k_w, (F, D), dtype=jnp.float32) * 0.02
    b_feat = jax.random.normal(k_b, (1, D), dtype=jnp.float32) * 0.02
    # The module registers `prototypes` as a zero buffer; zeros would NaN out
    # the normalization (as in PyTorch), so initialize them at random.
    prototypes = jax.random.normal(k_p, (C_cls, D), dtype=jnp.float32)

    params = npos_prepare_params(w_feat, b_feat, prototypes, temperature=0.1)

    # Case 1: tiny batch, single batch tile, single K step (K_TILE = F).
    score = npos_forward(x, params)
    score = jax.block_until_ready(score)
    ref = npos_reference(x, w_feat, b_feat, prototypes)
    assert score.shape == (B,)
    assert jnp.all(jnp.isfinite(score)), score
    # bf16 prototype matmul bounds kernel/reference agreement to ~1e-3.
    assert jnp.allclose(score, ref, atol=1e-3, rtol=1e-3), (score, ref)

    # Case 2: exercise >1 batch tile and >1 K step (padded rows, accumulator).
    B2 = 20
    x2 = jax.random.normal(k_x2, (B2, Cch, H, W), dtype=jnp.float32)
    score2 = npos_forward(x2, params, b_tile=16, k_tile=384)
    score2 = jax.block_until_ready(score2)
    ref2 = npos_reference(x2, w_feat, b_feat, prototypes)
    assert score2.shape == (B2,)
    assert jnp.all(jnp.isfinite(score2)), score2
    assert jnp.allclose(score2, ref2, atol=1e-3, rtol=1e-3), (score2, ref2)

    print("KERNEL_OK")
</pallas_src>

<mosaic_0001>
module attributes {stable_mosaic.version = 11 : i64} {
  func.func @npos_kernel(%arg0: i32, %arg1: i32, %arg2: memref<8x768xbf16, #tpu.memory_space<vmem>>, %arg3: memref<768x128xbf16, #tpu.memory_space<vmem>>, %arg4: memref<1x128xf32, #tpu.memory_space<vmem>>, %arg5: memref<128x128xbf16, #tpu.memory_space<vmem>>, %arg6: memref<8x128xf32, #tpu.memory_space<vmem>>, %arg7: memref<8x128xf32, #tpu.memory_space<vmem>>) attributes {dimension_semantics = [#tpu.dimension_semantics<parallel>, #tpu.dimension_semantics<arbitrary>], iteration_bounds = array<i64: 1, 1>, scalar_prefetch = 0 : i64, scratch_operands = 1 : i64, tpu.core_type = #tpu.core_type<tc>, window_params = [{transform_indices = @transform_0, window_bounds = array<i64: 8, 768>}, {transform_indices = @transform_1, window_bounds = array<i64: 768, 128>}, {pipeline_mode = #tpu.pipeline_mode<synchronous>, transform_indices = @transform_2, window_bounds = array<i64: 1, 128>}, {pipeline_mode = #tpu.pipeline_mode<synchronous>, transform_indices = @transform_3, window_bounds = array<i64: 128, 128>}, {transform_indices = @transform_4, window_bounds = array<i64: 8, 128>}]} {
    %c0_i32 = arith.constant 0 : i32
    %0 = arith.cmpi eq, %arg1, %c0_i32 : i32
    %1 = arith.extui %0 : i1 to i32
    %c0_i32_0 = arith.constant 0 : i32
    %2 = arith.cmpi ne, %1, %c0_i32_0 : i32
    scf.if %2 {
      %cst_10 = arith.constant 0.000000e+00 : f32
      %12 = vector.broadcast %cst_10 : f32 to vector<8x128xf32>
      %c0_11 = arith.constant 0 : index
      %c0_12 = arith.constant 0 : index
      %13 = vector.load %arg7[%c0_11, %c0_12] : memref<8x128xf32, #tpu.memory_space<vmem>>, vector<8x128xf32>
      tpu.vector_store %arg7[%c0_11, %c0_12], %12 {strides = array<i32>} : memref<8x128xf32, #tpu.memory_space<vmem>>, vector<8x128xf32>,
    } else {
    }
    %c0 = arith.constant 0 : index
    %c0_1 = arith.constant 0 : index
    %3 = vector.load %arg7[%c0, %c0_1] : memref<8x128xf32, #tpu.memory_space<vmem>>, vector<8x128xf32>
    %c0_2 = arith.constant 0 : index
    %c0_3 = arith.constant 0 : index
    %4 = vector.load %arg2[%c0_2, %c0_3] : memref<8x768xbf16, #tpu.memory_space<vmem>>, vector<8x768xbf16>
    %c0_4 = arith.constant 0 : index
    %c0_5 = arith.constant 0 : index
    %5 = vector.load %arg3[%c0_4, %c0_5] : memref<768x128xbf16, #tpu.memory_space<vmem>>, vector<768x128xbf16>
    %cst = arith.constant dense<0.000000e+00> : vector<8x128xf32>
    %6 = tpu.matmul %4, %5, %cst {dimension_numbers = #tpu.dot_dimension_numbers<[1], [0], [0], [1], [0, 0, 1, 1], [], []>} : vector<8x768xbf16>, vector<768x128xbf16>, vector<8x128xf32> -> vector<8x128xf32>
    %7 = arith.addf %3, %6 : vector<8x128xf32>
    %c0_6 = arith.constant 0 : index
    %c0_7 = arith.constant 0 : index
    %8 = vector.load %arg7[%c0_6, %c0_7] : memref<8x128xf32, #tpu.memory_space<vmem>>, vector<8x128xf32>
    tpu.vector_store %arg7[%c0_6, %c0_7], %7 {strides = array<i32>} : memref<8x128xf32, #tpu.memory_space<vmem>>, vector<8x128xf32>,
    %c0_i32_8 = arith.constant 0 : i32
    %9 = arith.cmpi eq, %arg1, %c0_i32_8 : i32
    %10 = arith.extui %9 : i1 to i32
    %c0_i32_9 = arith.constant 0 : i32
    %11 = arith.cmpi ne, %10, %c0_i32_9 : i32
    scf.if %11 {
      %c0_10 = arith.constant 0 : index
      %c0_11 = arith.constant 0 : index
      %12 = vector.load %arg7[%c0_10, %c0_11] : memref<8x128xf32, #tpu.memory_space<vmem>>, vector<8x128xf32>
      %c0_12 = arith.constant 0 : index
      %c0_13 = arith.constant 0 : index
      %13 = vector.load %arg4[%c0_12, %c0_13] : memref<1x128xf32, #tpu.memory_space<vmem>>, vector<1x128xf32>
      %14 = vector.broadcast %13 : vector<1x128xf32> to vector<8x128xf32>
      %15 = arith.addf %12, %14 : vector<8x128xf32>
      %16 = arith.mulf %15, %15 : vector<8x128xf32>
      %cst_14 = arith.constant dense<0.000000e+00> : vector<8xf32>
      %17 = vector.multi_reduction <add>, %16, %cst_14 [1] : vector<8x128xf32> to vector<8xf32>
      %18 = vector.shape_cast %17 : vector<8xf32> to vector<8x1xf32>
      %cst_15 = arith.constant 9.99999996E-13 : f32
      %19 = vector.broadcast %cst_15 : f32 to vector<8x1xf32>
      %20 = arith.addf %18, %19 : vector<8x1xf32>
      %21 = math.rsqrt %20 : vector<8x1xf32>
      %22 = vector.broadcast %21 : vector<8x1xf32> to vector<8x128xf32>
      %23 = arith.mulf %15, %22 : vector<8x128xf32>
      %24 = arith.truncf %23 : vector<8x128xf32> to vector<8x128xbf16>
      %c0_16 = arith.constant 0 : index
      %c0_17 = arith.constant 0 : index
      %25 = vector.load %arg5[%c0_16, %c0_17] : memref<128x128xbf16, #tpu.memory_space<vmem>>, vector<128x128xbf16>
      %cst_18 = arith.constant dense<0.000000e+00> : vector<8x128xf32>
      %26 = tpu.matmul %24, %25, %cst_18 {dimension_numbers = #tpu.dot_dimension_numbers<[1], [0], [0], [1], [0, 0, 1, 1], [], []>} : vector<8x128xbf16>, vector<128x128xbf16>, vector<8x128xf32> -> vector<8x128xf32>
      %27 = tpu.iota {dimensions = array<i32: 1>} : vector<8x128xi32>
      %c8_i32 = arith.constant 8 : i32
      %28 = vector.broadcast %c8_i32 : i32 to vector<8x128xi32>
      %29 = arith.cmpi slt, %27, %28 : vector<8x128xi32>
      %cst_19 = arith.constant 0xFF800000 : f32
      %30 = vector.broadcast %cst_19 : f32 to vector<8x128xf32>
      %31 = arith.select %29, %26, %30 : vector<8x128xi1>, vector<8x128xf32>
      %cst_20 = arith.constant dense<0xFF800000> : vector<8xf32>
      %32 = vector.multi_reduction <maximumf>, %31, %cst_20 [1] : vector<8x128xf32> to vector<8xf32>
      %33 = vector.shape_cast %32 : vector<8xf32> to vector<8x1xf32>
      %34 = vector.broadcast %33 : vector<8x1xf32> to vector<8x128xf32>
      %35 = arith.subf %31, %34 : vector<8x128xf32>
      %36 = math.exp %35 : vector<8x128xf32>
      %cst_21 = arith.constant dense<0.000000e+00> : vector<8xf32>
      %37 = vector.multi_reduction <add>, %36, %cst_21 [1] : vector<8x128xf32> to vector<8xf32>
      %38 = vector.shape_cast %37 : vector<8xf32> to vector<8x1xf32>
      %39 = tpu.reciprocal %38 : vector<8x1xf32> -> vector<8x1xf32>
      %cst_22 = arith.constant 0.000000e+00 : f32
      %40 = vector.broadcast %cst_22 : f32 to vector<8x1xf32>
      %41 = arith.subf %40, %39 : vector<8x1xf32>
      %42 = vector.shape_cast %41 : vector<8x1xf32> to vector<8x1xf32>
      %43 = vector.broadcast %42 : vector<8x1xf32> to vector<8x128xf32>
      %c0_23 = arith.constant 0 : index
      %c0_24 = arith.constant 0 : index
      %44 = vector.load %arg6[%c0_23, %c0_24] : memref<8x128xf32, #tpu.memory_space<vmem>>, vector<8x128xf32>
      tpu.vector_store %arg6[%c0_23, %c0_24], %43 {strides = array<i32>} : memref<8x128xf32, #tpu.memory_space<vmem>>, vector<8x128xf32>,
    } else {
    }
    return
  }
  func.func @transform_0(%arg0: i32, %arg1: i32) -> (i32, i32) {
    %c0_i32 = arith.constant 0 : i32
    return %arg0, %arg1 : i32, i32
  }
  func.func @transform_1(%arg0: i32, %arg1: i32) -> (i32, i32) {
    %c0_i32 = arith.constant 0 : i32
    %c0_i32_0 = arith.constant 0 : i32
    return %arg1, %c0_i32 : i32, i32
  }
  func.func @transform_2(%arg0: i32, %arg1: i32) -> (i32, i32) {
    %c0_i32 = arith.constant 0 : i32
    %c0_i32_0 = arith.constant 0 : i32
    %c0_i32_1 = arith.constant 0 : i32
    return %c0_i32, %c0_i32_0 : i32, i32
  }
  func.func @transform_3(%arg0: i32, %arg1: i32) -> (i32, i32) {
    %c0_i32 = arith.constant 0 : i32
    %c0_i32_0 = arith.constant 0 : i32
    %c0_i32_1 = arith.constant 0 : i32
    return %c0_i32, %c0_i32_0 : i32, i32
  }
  func.func @transform_4(%arg0: i32, %arg1: i32) -> (i32, i32) {
    %c0_i32 = arith.constant 0 : i32
    %c0_i32_0 = arith.constant 0 : i32
    return %arg0, %c0_i32 : i32, i32
  }
}

</mosaic_0001>

<llo_original>
// kernel: tpu_custom_call.1
$region0: #{tpu_custom_call.1}
  #allocation0 [shape = 'u32[]', space=smem, size = 0x4, offset = 0x4, fixed_abs, tag = 'smem constant byte address 0x4 - core index']
  #allocation1 [shape = 'u32[144,128]{1,0:T(1,128)}', space=vmem, size = 0x12000, scoped, tag = 'internal scratch']
  #allocation2 [shape = 'f32[8,128]{1,0:T(8,128)}', space=vmem, size = 0x1000, scoped, tag = 'scratch operand']
  %s0 = inlined_call_operand.hbm [shape: bf16[8,768], index: 0, kind: input, shape index: {}]
  %s1 = inlined_call_operand.hbm [shape: bf16[768,128], index: 1, kind: input, shape index: {}]
  %s2 = inlined_call_operand.vmem [shape: f32[1,128], index: 2, kind: input, shape index: {}]
  %s3 = inlined_call_operand.hbm [shape: bf16[128,128], index: 3, kind: input, shape index: {}]
  %s4 = inlined_call_operand.hbm [shape: f32[8,128], index: 4, kind: output, shape index: {}]
  %s5 = sld [smem:[#allocation0]]
  $region46: #{tpu_custom_call.1} parent=0
    _
  %s7 = ssub.s32 1, %s5
  %s8 = scalar_select 0, %s7, %s5
  $region1: #{tpu_custom_call.1} parent=0
    #allocation3 [shape = 'u8[12288]{0}', space=vmem, size = 0x3000, scoped, tag = 'input window, operand 0, single buffered']
    #allocation4 [shape = 's32[1]{0}', space=sflag, size = 0x4, scoped, tag = 'scoped memory for tpu_custom_call.1']
    #allocation5 [shape = 's32[1]{0}', space=sflag, size = 0x4, scoped, tag = 'scoped memory for tpu_custom_call.1']
    #allocation6 [shape = 'u8[196608]{0}', space=vmem, size = 0x30000, scoped, tag = 'input window, operand 1, single buffered']
    #allocation7 [shape = 's32[1]{0}', space=sflag, size = 0x4, scoped, tag = 'scoped memory for tpu_custom_call.1']
    #allocation8 [shape = 'u8[32768]{0}', space=vmem, size = 0x8000, scoped, tag = 'input window, operand 3, single buffered']
    #allocation9 [shape = 'u8[4096]{0}', space=vmem, size = 0x1000, scoped, tag = 'output window, operand 0, single buffered']
    %9 = vsyncpa [#allocation4], 0
    %10 = vsyncpa [#allocation7], 0
    %11 = vsyncpa [#allocation5], 0
    // Predicated region
    $region2: #{tpu_custom_call.1} parent=1 // pred_check
      _
    $region3: #{tpu_custom_call.1} parent=1 // pred_check_branch
      %13 = sbr.rel (0) target = $region5
    $region4: #{tpu_custom_call.1} parent=1 // pred_region
      %s15 = ssub.s32 384, 384
      %16 = vsyncadd [#allocation4], %s15
      %s18 = sshll.u32 [#allocation3], 4
      %s19 = int_to_ptr.vmem [resolvable:$true] %s18
      %21 = dma.hbm_to_vmem [thread:$0]  %s0, 384, %s19, [#allocation4]
    $region5: #{tpu_custom_call.1} parent=1 // pred_fallthru
      _
    // Predicated region
    $region6: #{tpu_custom_call.1} parent=1 // pred_check
      _
    $region7: #{tpu_custom_call.1} parent=1 // pred_check_branch
      %23 = sbr.rel (0) target = $region9
    $region8: #{tpu_custom_call.1} parent=1 // pred_region
      %s25 = ssub.s32 6144, 6144
      %26 = vsyncadd [#allocation7], %s25
      %s27 = sshll.u32 [#allocation6], 4
      %s28 = int_to_ptr.vmem [resolvable:$true] %s27
      %33 = dma.hbm_to_vmem [thread:$0]  %s1, 6144, %s28, [#allocation7], 64, 64, 4
    $region9: #{tpu_custom_call.1} parent=1 // pred_fallthru
      _
    // Predicated region
    $region10: #{tpu_custom_call.1} parent=1 // pred_check
      _
    $region11: #{tpu_custom_call.1} parent=1 // pred_check_branch
      %35 = sbr.rel (0) target = $region13
    $region12: #{tpu_custom_call.1} parent=1 // pred_region
      _
    $region13: #{tpu_custom_call.1} parent=1 // pred_fallthru
      _
    // Predicated region
    $region14: #{tpu_custom_call.1} parent=1 // pred_check
      _
    $region15: #{tpu_custom_call.1} parent=1 // pred_check_branch
      %37 = sbr.rel (0) target = $region17
    $region16: #{tpu_custom_call.1} parent=1 // pred_region
      %s39 = ssub.s32 1024, 1024
      %40 = vsyncadd [#allocation7], %s39
      %s41 = sshll.u32 [#allocation8], 4
      %s42 = int_to_ptr.vmem [resolvable:$true] %s41
      %47 = dma.hbm_to_vmem [thread:$0]  %s3, 1024, %s42, [#allocation7], 64, 64, 4
    $region17: #{tpu_custom_call.1} parent=1 // pred_fallthru
      _
    // Predicated region
    $region18: #{tpu_custom_call.1} parent=1 // pred_check
      _
    $region19: #{tpu_custom_call.1} parent=1 // pred_check_branch
      %49 = sbr.rel (0) target = $region21
    $region20: #{tpu_custom_call.1} parent=1 // pred_region
      %50 = dma.done [#allocation4], 384
    $region21: #{tpu_custom_call.1} parent=1 // pred_fallthru
      _
    // Predicated region
    $region22: #{tpu_custom_call.1} parent=1 // pred_check
      _
    $region23: #{tpu_custom_call.1} parent=1 // pred_check_branch
      %52 = sbr.rel (0) target = $region25
    $region24: #{tpu_custom_call.1} parent=1 // pred_region
      %53 = dma.done [#allocation7], 6144
    $region25: #{tpu_custom_call.1} parent=1 // pred_fallthru
      _
    // Predicated region
    $region26: #{tpu_custom_call.1} parent=1 // pred_check
      _
    $region27: #{tpu_custom_call.1} parent=1 // pred_check_branch
      %55 = sbr.rel (0) target = $region29
    $region28: #{tpu_custom_call.1} parent=1 // pred_region
      %56 = dma.done [#allocation7], 1024
    $region29: #{tpu_custom_call.1} parent=1 // pred_fallthru
      _
    %p58 = scmp.eq.s32.totalorder 0, 0
    // Predicated region
    $region30: #{tpu_custom_call.1} parent=1 // pred_check
      %p59 = pneg %p58
    $region31: #{tpu_custom_call.1} parent=1 // pred_check_branch
      %61 = sbr.rel (%p59) target = $region33
    $region32: #{tpu_custom_call.1} parent=1 // pred_region
      %62 = vst [vmem:[#allocation2] sm:$0xff] 0.0
    $region33: #{tpu_custom_call.1} parent=1 // pred_fallthru
      _
    %v63 = vld [vmem:[#allocation2] sm:$0xff]
    %v64 = vld [vmem:[#allocation3] sm:$0xff]
    %v65 = vld [vmem:[#allocation3 + $0x8] sm:$0xff]
    %v66 = vld [vmem:[#allocation3 + $0x10] sm:$0xff]
    %v67 = vld [vmem:[#allocation6] sm:$0xf]
    %v68 = vld [vmem:[#allocation6 + $0x4] sm:$0xf]
    %v69 = vld [vmem:[#allocation6 + $0x8] sm:$0xf]
    %v70 = vld [vmem:[#allocation6 + $0xc] sm:$0xf]
    %v71 = vld [vmem:[#allocation6 + $0x10] sm:$0xf]
    %v72 = vld [vmem:[#allocation6 + $0x14] sm:$0xf]
    %v73 = vld [vmem:[#allocation6 + $0x18] sm:$0xf]
    %v74 = vld [vmem:[#allocation6 + $0x1c] sm:$0xf]
    %v75 = vld [vmem:[#allocation6 + $0x20] sm:$0xf]
    %v76 = vld [vmem:[#allocation6 + $0x24] sm:$0xf]
    %v77 = vld [vmem:[#allocation6 + $0x28] sm:$0xf]
    %v78 = vld [vmem:[#allocation6 + $0x2c] sm:$0xf]
    %v79 = vld [vmem:[#allocation6 + $0x30] sm:$0xf]
    %v80 = vld [vmem:[#allocation6 + $0x34] sm:$0xf]
    %v81 = vld [vmem:[#allocation6 + $0x38] sm:$0xf]
    %v82 = vld [vmem:[#allocation6 + $0x3c] sm:$0xf]
    %v83 = vld [vmem:[#allocation6 + $0x40] sm:$0xf]
    %v84 = vld [vmem:[#allocation6 + $0x44] sm:$0xf]
    %v85 = vld [vmem:[#allocation6 + $0x48] sm:$0xf]
    %v86 = vld [vmem:[#allocation6 + $0x4c] sm:$0xf]
    %v87 = vld [vmem:[#allocation6 + $0x50] sm:$0xf]
    %v88 = vld [vmem:[#allocation6 + $0x54] sm:$0xf]
    %v89 = vld [vmem:[#allocation6 + $0x58] sm:$0xf]
    %v90 = vld [vmem:[#allocation6 + $0x5c] sm:$0xf]
    %v91 = vld [vmem:[#allocation6 + $0x60] sm:$0xf]
    %v92 = vld [vmem:[#allocation6 + $0x64] sm:$0xf]
    %v93 = vld [vmem:[#allocation6 + $0x68] sm:$0xf]
    %v94 = vld [vmem:[#allocation6 + $0x6c] sm:$0xf]
    %v95 = vld [vmem:[#allocation6 + $0x70] sm:$0xf]
    %v96 = vld [vmem:[#allocation6 + $0x74] sm:$0xf]
    %v97 = vld [vmem:[#allocation6 + $0x78] sm:$0xf]
    %v98 = vld [vmem:[#allocation6 + $0x7c] sm:$0xf]
    %v99 = vld [vmem:[#allocation6 + $0x80] sm:$0xf]
    %v100 = vld [vmem:[#allocation6 + $0x84] sm:$0xf]
    %v101 = vld [vmem:[#allocation6 + $0x88] sm:$0xf]
    %v102 = vld [vmem:[#allocation6 + $0x8c] sm:$0xf]
    %v103 = vld [vmem:[#allocation6 + $0x90] sm:$0xf]
    %v104 = vld [vmem:[#allocation6 + $0x94] sm:$0xf]
    %v105 = vld [vmem:[#allocation6 + $0x98] sm:$0xf]
    %v106 = vld [vmem:[#allocation6 + $0x9c] sm:$0xf]
    %v107 = vld [vmem:[#allocation6 + $0xa0] sm:$0xf]
    %v108 = vld [vmem:[#allocation6 + $0xa4] sm:$0xf]
    %v109 = vld [vmem:[#allocation6 + $0xa8] sm:$0xf]
    %v110 = vld [vmem:[#allocation6 + $0xac] sm:$0xf]
    %v111 = vld [vmem:[#allocation6 + $0xb0] sm:$0xf]
    %v112 = vld [vmem:[#allocation6 + $0xb4] sm:$0xf]
    %v113 = vld [vmem:[#allocation6 + $0xb8] sm:$0xf]
    %v114 = vld [vmem:[#allocation6 + $0xbc] sm:$0xf]
    %v115 = vld [vmem:[#allocation6 + $0xc0] sm:$0xf]
    %v116 = vld [vmem:[#allocation6 + $0xc4] sm:$0xf]
    %v117 = vld [vmem:[#allocation6 + $0xc8] sm:$0xf]
    %v118 = vld [vmem:[#allocation6 + $0xcc] sm:$0xf]
    %v119 = vld [vmem:[#allocation6 + $0xd0] sm:$0xf]
    %v120 = vld [vmem:[#allocation6 + $0xd4] sm:$0xf]
    %v121 = vld [vmem:[#allocation6 + $0xd8] sm:$0xf]
    %v122 = vld [vmem:[#allocation6 + $0xdc] sm:$0xf]
    %v123 = vld [vmem:[#allocation6 + $0xe0] sm:$0xf]
    %v124 = vld [vmem:[#allocation6 + $0xe4] sm:$0xf]
    %v125 = vld [vmem:[#allocation6 + $0xe8] sm:$0xf]
    %v126 = vld [vmem:[#allocation6 + $0xec] sm:$0xf]
    %v127 = vld [vmem:[#allocation6 + $0xf0] sm:$0xf]
    %v128 = vld [vmem:[#allocation6 + $0xf4] sm:$0xf]
    %v129 = vld [vmem:[#allocation6 + $0xf8] sm:$0xf]
    %v130 = vld [vmem:[#allocation6 + $0xfc] sm:$0xf]
    %v131 = vld [vmem:[#allocation6 + $0x100] sm:$0xf]
    %v132 = vld [vmem:[#allocation6 + $0x104] sm:$0xf]
    %v133 = vld [vmem:[#allocation6 + $0x108] sm:$0xf]
    %v134 = vld [vmem:[#allocation6 + $0x10c] sm:$0xf]
    %v135 = vld [vmem:[#allocation6 + $0x110] sm:$0xf]
    %v136 = vld [vmem:[#allocation6 + $0x114] sm:$0xf]
    %v137 = vld [vmem:[#allocation6 + $0x118] sm:$0xf]
    %v138 = vld [vmem:[#allocation6 + $0x11c] sm:$0xf]
    %v139 = vld [vmem:[#allocation6 + $0x120] sm:$0xf]
    %v140 = vld [vmem:[#allocation6 + $0x124] sm:$0xf]
    %v141 = vld [vmem:[#allocation6 + $0x128] sm:$0xf]
    %v142 = vld [vmem:[#allocation6 + $0x12c] sm:$0xf]
    %v143 = vld [vmem:[#allocation6 + $0x130] sm:$0xf]
    %v144 = vld [vmem:[#allocation6 + $0x134] sm:$0xf]
    %v145 = vld [vmem:[#allocation6 + $0x138] sm:$0xf]
    %v146 = vld [vmem:[#allocation6 + $0x13c] sm:$0xf]
    %v147 = vld [vmem:[#allocation6 + $0x140] sm:$0xf]
    %v148 = vld [vmem:[#allocation6 + $0x144] sm:$0xf]
    %v149 = vld [vmem:[#allocation6 + $0x148] sm:$0xf]
    %v150 = vld [vmem:[#allocation6 + $0x14c] sm:$0xf]
    %v151 = vld [vmem:[#allocation6 + $0x150] sm:$0xf]
    %v152 = vld [vmem:[#allocation6 + $0x154] sm:$0xf]
    %v153 = vld [vmem:[#allocation6 + $0x158] sm:$0xf]
    %v154 = vld [vmem:[#allocation6 + $0x15c] sm:$0xf]
    %v155 = vld [vmem:[#allocation6 + $0x160] sm:$0xf]
    %v156 = vld [vmem:[#allocation6 + $0x164] sm:$0xf]
    %v157 = vld [vmem:[#allocation6 + $0x168] sm:$0xf]
    %v158 = vld [vmem:[#allocation6 + $0x16c] sm:$0xf]
    %v159 = vld [vmem:[#allocation6 + $0x170] sm:$0xf]
    %v160 = vld [vmem:[#allocation6 + $0x174] sm:$0xf]
    %v161 = vld [vmem:[#allocation6 + $0x178] sm:$0xf]
    %v162 = vld [vmem:[#allocation6 + $0x17c] sm:$0xf]
    %v166 = vunpack.c.l.b16 %v64
    %v167 = vunpack.c.h.b16 %v64
    %v168 = vunpack.c.l.b16 %v65
    %v169 = vunpack.c.h.b16 %v65
    %v170 = vunpack.c.l.b16 %v66
    %v171 = vunpack.c.h.b16 %v66
    %v172 = vpack.c.b16 %v166, %v166
    %v173 = vpack.c.b16 %v167, %v167
    %v174 = vpack.c.b16 %v168, %v168
    %v175 = vpack.c.b16 %v169, %v169
    %v176 = vpack.c.b16 %v170, %v170
    %v177 = vpack.c.b16 %v171, %v171
    %v280 = vunpack.c.l.b16 %v67
    %v281 = vunpack.c.l.b16 %v68
    %v282 = vunpack.c.l.b16 %v69
    %v283 = vunpack.c.l.b16 %v70
    %v284 = vunpack.c.l.b16 %v71
    %v285 = vunpack.c.l.b16 %v72
    %v286 = vunpack.c.l.b16 %v73
    %v287 = vunpack.c.l.b16 %v74
    %v288 = vunpack.c.l.b16 %v75
    %v289 = vunpack.c.l.b16 %v76
    %v290 = vunpack.c.l.b16 %v77
    %v291 = vunpack.c.l.b16 %v78
    %v292 = vunpack.c.l.b16 %v79
    %v293 = vunpack.c.l.b16 %v80
    %v294 = vunpack.c.l.b16 %v81
    %v295 = vunpack.c.l.b16 %v82
    %v296 = vunpack.c.l.b16 %v83
    %v297 = vunpack.c.l.b16 %v84
    %v298 = vunpack.c.l.b16 %v85
    %v299 = vunpack.c.l.b16 %v86
    %v300 = vunpack.c.l.b16 %v87
    %v301 = vunpack.c.l.b16 %v88
    %v302 = vunpack.c.l.b16 %v89
    %v303 = vunpack.c.l.b16 %v90
    %v304 = vunpack.c.l.b16 %v91
    %v305 = vunpack.c.l.b16 %v92
    %v306 = vunpack.c.l.b16 %v93
    %v307 = vunpack.c.l.b16 %v94
    %v308 = vunpack.c.l.b16 %v95
    %v309 = vunpack.c.l.b16 %v96
    %v310 = vunpack.c.l.b16 %v97
    %v311 = vunpack.c.l.b16 %v98
    %v312 = vunpack.c.l.b16 %v99
    %v313 = vunpack.c.l.b16 %v100
    %v314 = vunpack.c.l.b16 %v101
    %v315 = vunpack.c.l.b16 %v102
    %v316 = vunpack.c.l.b16 %v103
    %v317 = vunpack.c.l.b16 %v104
    %v318 = vunpack.c.l.b16 %v105
    %v319 = vunpack.c.l.b16 %v106
    %v320 = vunpack.c.l.b16 %v107
    %v321 = vunpack.c.l.b16 %v108
    %v322 = vunpack.c.l.b16 %v109
    %v323 = vunpack.c.l.b16 %v110
    %v324 = vunpack.c.l.b16 %v111
    %v325 = vunpack.c.l.b16 %v112
    %v326 = vunpack.c.l.b16 %v113
    %v327 = vunpack.c.l.b16 %v114
    %v328 = vunpack.c.l.b16 %v115
    %v329 = vunpack.c.l.b16 %v116
    %v330 = vunpack.c.l.b16 %v117
    %v331 = vunpack.c.l.b16 %v118
    %v332 = vunpack.c.l.b16 %v119
    %v333 = vunpack.c.l.b16 %v120
    %v334 = vunpack.c.l.b16 %v121
    %v335 = vunpack.c.l.b16 %v122
    %v336 = vunpack.c.l.b16 %v123
    %v337 = vunpack.c.l.b16 %v124
    %v338 = vunpack.c.l.b16 %v125
    %v339 = vunpack.c.l.b16 %v126
    %v340 = vunpack.c.l.b16 %v127
    %v341 = vunpack.c.l.b16 %v128
    %v342 = vunpack.c.l.b16 %v129
    %v343 = vunpack.c.l.b16 %v130
    %v344 = vunpack.c.l.b16 %v131
    %v345 = vunpack.c.l.b16 %v132
    %v346 = vunpack.c.l.b16 %v133
    %v347 = vunpack.c.l.b16 %v134
    %v348 = vunpack.c.l.b16 %v135
    %v349 = vunpack.c.l.b16 %v136
    %v350 = vunpack.c.l.b16 %v137
    %v351 = vunpack.c.l.b16 %v138
    %v352 = vunpack.c.l.b16 %v139
    %v353 = vunpack.c.l.b16 %v140
    %v354 = vunpack.c.l.b16 %v141
    %v355 = vunpack.c.l.b16 %v142
    %v356 = vunpack.c.l.b16 %v143
    %v357 = vunpack.c.l.b16 %v144
    %v358 = vunpack.c.l.b16 %v145
    %v359 = vunpack.c.l.b16 %v146
    %v360 = vunpack.c.l.b16 %v147
    %v361 = vunpack.c.l.b16 %v148
    %v362 = vunpack.c.l.b16 %v149
    %v363 = vunpack.c.l.b16 %v150
    %v364 = vunpack.c.l.b16 %v151
    %v365 = vunpack.c.l.b16 %v152
    %v366 = vunpack.c.l.b16 %v153
    %v367 = vunpack.c.l.b16 %v154
    %v368 = vunpack.c.l.b16 %v155
    %v369 = vunpack.c.l.b16 %v156
    %v370 = vunpack.c.l.b16 %v157
    %v371 = vunpack.c.l.b16 %v158
    %v372 = vunpack.c.l.b16 %v159
    %v373 = vunpack.c.l.b16 %v160
    %v374 = vunpack.c.l.b16 %v161
    %v375 = vunpack.c.l.b16 %v162
    %v376 = vpack.c.b16 %v281, %v280
    %v377 = vpack.c.b16 %v283, %v282
    %v378 = vpack.c.b16 %v285, %v284
    %v379 = vpack.c.b16 %v287, %v286
    %v380 = vpack.c.b16 %v289, %v288
    %v381 = vpack.c.b16 %v291, %v290
    %v382 = vpack.c.b16 %v293, %v292
    %v383 = vpack.c.b16 %v295, %v294
    %v384 = vpack.c.b16 %v297, %v296
    %v385 = vpack.c.b16 %v299, %v298
    %v386 = vpack.c.b16 %v301, %v300
    %v387 = vpack.c.b16 %v303, %v302
    %v388 = vpack.c.b16 %v305, %v304
    %v389 = vpack.c.b16 %v307, %v306
    %v390 = vpack.c.b16 %v309, %v308
    %v391 = vpack.c.b16 %v311, %v310
    %v392 = vpack.c.b16 %v313, %v312
    %v393 = vpack.c.b16 %v315, %v314
    %v394 = vpack.c.b16 %v317, %v316
    %v395 = vpack.c.b16 %v319, %v318
    %v396 = vpack.c.b16 %v321, %v320
    %v397 = vpack.c.b16 %v323, %v322
    %v398 = vpack.c.b16 %v325, %v324
    %v399 = vpack.c.b16 %v327, %v326
    %v400 = vpack.c.b16 %v329, %v328
    %v401 = vpack.c.b16 %v331, %v330
    %v402 = vpack.c.b16 %v333, %v332
    %v403 = vpack.c.b16 %v335, %v334
    %v404 = vpack.c.b16 %v337, %v336
    %v405 = vpack.c.b16 %v339, %v338
    %v406 = vpack.c.b16 %v341, %v340
    %v407 = vpack.c.b16 %v343, %v342
    %v408 = vpack.c.b16 %v345, %v344
    %v409 = vpack.c.b16 %v347, %v346
    %v410 = vpack.c.b16 %v349, %v348
    %v411 = vpack.c.b16 %v351, %v350
    %v412 = vpack.c.b16 %v353, %v352
    %v413 = vpack.c.b16 %v355, %v354
    %v414 = vpack.c.b16 %v357, %v356
    %v415 = vpack.c.b16 %v359, %v358
    %v416 = vpack.c.b16 %v361, %v360
    %v417 = vpack.c.b16 %v363, %v362
    %v418 = vpack.c.b16 %v365, %v364
    %v419 = vpack.c.b16 %v367, %v366
    %v420 = vpack.c.b16 %v369, %v368
    %v421 = vpack.c.b16 %v371, %v370
    %v422 = vpack.c.b16 %v373, %v372
    %v423 = vpack.c.b16 %v375, %v374
    %472 = vmatprep.subr.bf16.mxu0 0
    %473 = vmatpush1.bf16.msra.mxu0 %v376
    %474 = vmatprep.subr.bf16.mxu0 0
    %475 = vmatpush1.bf16.msra.mxu0 %v377
    %476 = vmatprep.subr.bf16.mxu0 0
    %477 = vmatpush1.bf16.msra.mxu0 %v378
    %478 = vmatprep.subr.bf16.mxu0 0
    %479 = vmatpush1.bf16.msra.mxu0 %v379
    %480 = vmatprep.subr.bf16.mxu0 0
    %481 = vmatpush1.bf16.msra.mxu0 %v380
    %482 = vmatprep.subr.bf16.mxu0 0
    %483 = vmatpush1.bf16.msra.mxu0 %v381
    %484 = vmatprep.subr.bf16.mxu0 0
    %485 = vmatpush1.bf16.msra.mxu0 %v382
    %486 = vmatprep.subr.bf16.mxu0 0
    %487 = vmatpush1.bf16.msra.mxu0 %v383
    %488 = vmatprep.subr.bf16.mxu0 0
    %489 = vmatpush1.bf16.msra.mxu0 %v384
    %490 = vmatprep.subr.bf16.mxu0 0
    %491 = vmatpush1.bf16.msra.mxu0 %v385
    %492 = vmatprep.subr.bf16.mxu0 0
    %493 = vmatpush1.bf16.msra.mxu0 %v386
    %494 = vmatprep.subr.bf16.mxu0 0
    %495 = vmatpush1.bf16.msra.mxu0 %v387
    %496 = vmatprep.subr.bf16.mxu0 0
    %497 = vmatpush1.bf16.msra.mxu0 %v388
    %498 = vmatprep.subr.bf16.mxu0 0
    %499 = vmatpush1.bf16.msra.mxu0 %v389
    %500 = vmatprep.subr.bf16.mxu0 0
    %501 = vmatpush1.bf16.msra.mxu0 %v390
    %502 = vmatprep.subr.bf16.mxu0 0
    %503 = vmatpush1.bf16.msra.mxu0 %v391
    %504 = vmatprep.mubr.bf16.mxu0 %v173
    %505 = vmatmul.mubr.bf16.gmra.mrb[0].mxu0 %v172
    %v506 = vpop.f32.mrb[0].mxu0
    %v507 = vadd.f32 0.0, %v506
    %v508 = vpop.f32.mrb[0].mxu0
    %v509 = vpop.f32.mrb[0].mxu0
    %v510 = vpop.f32.mrb[0].mxu0
    %511 = vdwg.mxu0
    %512 = vmatprep.subr.bf16.mxu0 0
    %513 = vmatpush1.bf16.msra.mxu0 %v392
    %514 = vmatprep.subr.bf16.mxu0 0
    %515 = vmatpush1.bf16.msra.mxu0 %v393
    %516 = vmatprep.subr.bf16.mxu0 0
    %517 = vmatpush1.bf16.msra.mxu0 %v394
    %518 = vmatprep.subr.bf16.mxu0 0
    %519 = vmatpush1.bf16.msra.mxu0 %v395
    %520 = vmatprep.subr.bf16.mxu0 0
    %521 = vmatpush1.bf16.msra.mxu0 %v396
    %522 = vmatprep.subr.bf16.mxu0 0
    %523 = vmatpush1.bf16.msra.mxu0 %v397
    %524 = vmatprep.subr.bf16.mxu0 0
    %525 = vmatpush1.bf16.msra.mxu0 %v398
    %526 = vmatprep.subr.bf16.mxu0 0
    %527 = vmatpush1.bf16.msra.mxu0 %v399
    %528 = vmatprep.subr.bf16.mxu0 0
    %529 = vmatpush1.bf16.msra.mxu0 %v400
    %530 = vmatprep.subr.bf16.mxu0 0
    %531 = vmatpush1.bf16.msra.mxu0 %v401
    %532 = vmatprep.subr.bf16.mxu0 0
    %533 = vmatpush1.bf16.msra.mxu0 %v402
    %534 = vmatprep.subr.bf16.mxu0 0
    %535 = vmatpush1.bf16.msra.mxu0 %v403
    %536 = vmatprep.subr.bf16.mxu0 0
    %537 = vmatpush1.bf16.msra.mxu0 %v404
    %538 = vmatprep.subr.bf16.mxu0 0
    %539 = vmatpush1.bf16.msra.mxu0 %v405
    %540 = vmatprep.subr.bf16.mxu0 0
    %541 = vmatpush1.bf16.msra.mxu0 %v406
    %542 = vmatprep.subr.bf16.mxu0 0
    %543 = vmatpush1.bf16.msra.mxu0 %v407
    %544 = vmatprep.mubr.bf16.mxu0 %v175
    %545 = vmatmul.mubr.bf16.gmra.mrb[0].mxu0 %v174
    %v546 = vpop.f32.mrb[0].mxu0
    %v547 = vadd.f32 %v507, %v546
    %v548 = vpop.f32.mrb[0].mxu0
    %v549 = vpop.f32.mrb[0].mxu0
    %v550 = vpop.f32.mrb[0].mxu0
    %551 = vdwg.mxu0
    %552 = vmatprep.subr.bf16.mxu0 0
    %553 = vmatpush1.bf16.msra.mxu0 %v408
    %554 = vmatprep.subr.bf16.mxu0 0
    %555 = vmatpush1.bf16.msra.mxu0 %v409
    %556 = vmatprep.subr.bf16.mxu0 0
    %557 = vmatpush1.bf16.msra.mxu0 %v410
    %558 = vmatprep.subr.bf16.mxu0 0
    %559 = vmatpush1.bf16.msra.mxu0 %v411
    %560 = vmatprep.subr.bf16.mxu0 0
    %561 = vmatpush1.bf16.msra.mxu0 %v412
    %562 = vmatprep.subr.bf16.mxu0 0
    %563 = vmatpush1.bf16.msra.mxu0 %v413
    %564 = vmatprep.subr.bf16.mxu0 0
    %565 = vmatpush1.bf16.msra.mxu0 %v414
    %566 = vmatprep.subr.bf16.mxu0 0
    %567 = vmatpush1.bf16.msra.mxu0 %v415
    %568 = vmatprep.subr.bf16.mxu0 0
    %569 = vmatpush1.bf16.msra.mxu0 %v416
    %570 = vmatprep.subr.bf16.mxu0 0
    %571 = vmatpush1.bf16.msra.mxu0 %v417
    %572 = vmatprep.subr.bf16.mxu0 0
    %573 = vmatpush1.bf16.msra.mxu0 %v418
    %574 = vmatprep.subr.bf16.mxu0 0
    %575 = vmatpush1.bf16.msra.mxu0 %v419
    %576 = vmatprep.subr.bf16.mxu0 0
    %577 = vmatpush1.bf16.msra.mxu0 %v420
    %578 = vmatprep.subr.bf16.mxu0 0
    %579 = vmatpush1.bf16.msra.mxu0 %v421
    %580 = vmatprep.subr.bf16.mxu0 0
    %581 = vmatpush1.bf16.msra.mxu0 %v422
    %582 = vmatprep.subr.bf16.mxu0 0
    %583 = vmatpush1.bf16.msra.mxu0 %v423
    %584 = vmatprep.mubr.bf16.mxu0 %v177
    %585 = vmatmul.mubr.bf16.gmra.mrb[0].mxu0 %v176
    %v586 = vpop.f32.mrb[0].mxu0
    %v587 = vadd.f32 %v547, %v586
    %v588 = vpop.f32.mrb[0].mxu0
    %v589 = vpop.f32.mrb[0].mxu0
    %v590 = vpop.f32.mrb[0].mxu0
    %591 = vdwg.mxu0
    %v592 = vadd.f32 %v63, %v587
    %593 = vst [vmem:[#allocation2] sm:$0xff] %v592
    // Predicated region
    $region34: #{tpu_custom_call.1} parent=1 // pred_check
      %p594 = pneg %p58
    $region35: #{tpu_custom_call.1} parent=1 // pred_check_branch
      %596 = sbr.rel (%p594) target = $region37
    $region36: #{tpu_custom_call.1} parent=1 // pred_region
      %v597 = vld [vmem:[#allocation2] sm:$0xff]
      %v598 = vld [vmem:[%s2] sm:$0x1]
      %v600 = vlaneseq
      %v601 = vshrl.u32 %v600, 7
      %v602 = vsub.s32 0, %v601
      %v603 = vrot.slane %v598, %v602
      %v605 = vadd.f32 %v597, %v603
      %v606 = vmul.f32 %v605, %v605
      %607 = vadd.xlane.f32.xlu0 %v606
      %v608 = vpop.xlane.xlu0 %607
      %v609 = vadd.f32 %v608, 1e-12
      %v610 = vrsqrt.pop %v609
      %v611 = vmul.f32 %v605, %v610
      %v612 = vpack.c.bf16 %v611, %v611
      %v613 = vld [vmem:[#allocation8] sm:$0xf]
      %v614 = vld [vmem:[#allocation8 + $0x4] sm:$0xf]
      %v615 = vld [vmem:[#allocation8 + $0x8] sm:$0xf]
      %v616 = vld [vmem:[#allocation8 + $0xc] sm:$0xf]
      %v617 = vld [vmem:[#allocation8 + $0x10] sm:$0xf]
      %v618 = vld [vmem:[#allocation8 + $0x14] sm:$0xf]
      %v619 = vld [vmem:[#allocation8 + $0x18] sm:$0xf]
      %v620 = vld [vmem:[#allocation8 + $0x1c] sm:$0xf]
      %v621 = vld [vmem:[#allocation8 + $0x20] sm:$0xf]
      %v622 = vld [vmem:[#allocation8 + $0x24] sm:$0xf]
      %v623 = vld [vmem:[#allocation8 + $0x28] sm:$0xf]
      %v624 = vld [vmem:[#allocation8 + $0x2c] sm:$0xf]
      %v625 = vld [vmem:[#allocation8 + $0x30] sm:$0xf]
      %v626 = vld [vmem:[#allocation8 + $0x34] sm:$0xf]
      %v627 = vld [vmem:[#allocation8 + $0x38] sm:$0xf]
      %v628 = vld [vmem:[#allocation8 + $0x3c] sm:$0xf]
      %v645 = vunpack.c.l.b16 %v613
      %v646 = vunpack.c.l.b16 %v614
      %v647 = vunpack.c.l.b16 %v615
      %v648 = vunpack.c.l.b16 %v616
      %v649 = vunpack.c.l.b16 %v617
      %v650 = vunpack.c.l.b16 %v618
      %v651 = vunpack.c.l.b16 %v619
      %v652 = vunpack.c.l.b16 %v620
      %v653 = vunpack.c.l.b16 %v621
      %v654 = vunpack.c.l.b16 %v622
      %v655 = vunpack.c.l.b16 %v623
      %v656 = vunpack.c.l.b16 %v624
      %v657 = vunpack.c.l.b16 %v625
      %v658 = vunpack.c.l.b16 %v626
      %v659 = vunpack.c.l.b16 %v627
      %v660 = vunpack.c.l.b16 %v628
      %v661 = vpack.c.b16 %v646, %v645
      %v662 = vpack.c.b16 %v648, %v647
      %v663 = vpack.c.b16 %v650, %v649
      %v664 = vpack.c.b16 %v652, %v651
      %v665 = vpack.c.b16 %v654, %v653
      %v666 = vpack.c.b16 %v656, %v655
      %v667 = vpack.c.b16 %v658, %v657
      %v668 = vpack.c.b16 %v660, %v659
      %677 = vmatprep.subr.bf16.mxu0 0
      %678 = vmatpush1.bf16.msra.mxu0 %v661
      %679 = vmatprep.subr.bf16.mxu0 0
      %680 = vmatpush1.bf16.msra.mxu0 %v662
      %681 = vmatprep.subr.bf16.mxu0 0
      %682 = vmatpush1.bf16.msra.mxu0 %v663
      %683 = vmatprep.subr.bf16.mxu0 0
      %684 = vmatpush1.bf16.msra.mxu0 %v664
      %685 = vmatprep.subr.bf16.mxu0 0
      %686 = vmatpush1.bf16.msra.mxu0 %v665
      %687 = vmatprep.subr.bf16.mxu0 0
      %688 = vmatpush1.bf16.msra.mxu0 %v666
      %689 = vmatprep.subr.bf16.mxu0 0
      %690 = vmatpush1.bf16.msra.mxu0 %v667
      %691 = vmatprep.subr.bf16.mxu0 0
      %692 = vmatpush1.bf16.msra.mxu0 %v668
      %693 = vmatprep.subr.bf16.mxu0 0
      %694 = vmatpush1.bf16.msra.mxu0 0
      %695 = vmatprep.subr.bf16.mxu0 0
      %696 = vmatpush1.bf16.msra.mxu0 0
      %697 = vmatprep.subr.bf16.mxu0 0
      %698 = vmatpush1.bf16.msra.mxu0 0
      %699 = vmatprep.subr.bf16.mxu0 0
      %700 = vmatpush1.bf16.msra.mxu0 0
      %701 = vmatprep.subr.bf16.mxu0 0
      %702 = vmatpush1.bf16.msra.mxu0 0
      %703 = vmatprep.subr.bf16.mxu0 0
      %704 = vmatpush1.bf16.msra.mxu0 0
      %705 = vmatprep.subr.bf16.mxu0 0
      %706 = vmatpush1.bf16.msra.mxu0 0
      %707 = vmatprep.subr.bf16.mxu0 0
      %708 = vmatpush1.bf16.msra.mxu0 0
      %709 = vmatprep.mubr.bf16.mxu0 0
      %710 = vmatmul.mubr.bf16.gmra.mrb[0].mxu0 %v612
      %v711 = vpop.f32.mrb[0].mxu0
      %v712 = vadd.f32 0.0, %v711
      %v713 = vpop.f32.mrb[0].mxu0
      %v714 = vpop.f32.mrb[0].mxu0
      %v715 = vpop.f32.mrb[0].mxu0
      %716 = vdwg.mxu0
      %v717 = vlaneseq
      %v718 = vand.u32 %v717, 127
      %vm719 = vcmp.lt.s32.totalorder %v718, 8
      %v720 = vsel %vm719, %v712, -inf
      %721 = vmax.xlane.f32.xlu0 %v720
      %v722 = vpop.xlane.xlu0 %721
      %v723 = vsub.f32 %v720, %v722
      %v724 = vmul.f32 %v723, 1.442695
      %v725 = vpow.pop %v724
      %726 = vadd.xlane.f32.xlu0 %v725
      %v727 = vpop.xlane.xlu0 %726
      %v728 = vrcp.pop %v727
      %v729 = vsub.f32 0.0, %v728
      %730 = vst [vmem:[#allocation9] sm:$0xff] %v729
    $region37: #{tpu_custom_call.1} parent=1 // pred_fallthru
      _
    // Predicated region
    $region38: #{tpu_custom_call.1} parent=1 // pred_check
      _
    $region39: #{tpu_custom_call.1} parent=1 // pred_check_branch
      %732 = sbr.rel (0) target = $region41
    $region40: #{tpu_custom_call.1} parent=1 // pred_region
      %s734 = ssub.s32 128, 128
      %735 = vsyncadd [#allocation5], %s734
      %s737 = sshll.u32 [#allocation9], 4
      %s738 = int_to_ptr.vmem [resolvable:$true] %s737
      %740 = dma.vmem_to_hbm [thread:$0]  %s738, 128, %s4, [#allocation5]
    $region41: #{tpu_custom_call.1} parent=1 // pred_fallthru
      _
    // Predicated region
    $region42: #{tpu_custom_call.1} parent=1 // pred_check
      _
    $region43: #{tpu_custom_call.1} parent=1 // pred_check_branch
      %742 = sbr.rel (0) target = $region45
    $region44: #{tpu_custom_call.1} parent=1 // pred_region
      %743 = dma.done [#allocation5], 128
    $region45: #{tpu_custom_call.1} parent=1 // pred_fallthru
      _
    %744 = vsyncpa [#allocation4], 1
    %745 = vsyncpa [#allocation7], 1
    %746 = vsyncpa [#allocation5], 1

</llo_original>
